<compile_context>
chip_gen: v6e
topology: v6e:2x2x1
jax: 0.10.0
libtpu: 0.0.40
codegen_flags: <defaults>
</compile_context>

<pallas_src>
import jax
import jax.numpy as jnp
from jax import lax
from jax.experimental import pallas as pl
from jax.experimental.pallas import tpu as pltpu

_LANES = 128
_TILE_ROWS = 1024          # rows of 128 lanes per grid step (f32: 512 KiB per input block)
_NUM_SPLITS = 2            # leading "parallel" grid axis -> both TCs on v7x, neutral on v5e/v6e
_PALLAS_MIN_ELEMS = 1024   # below this, plain JAX is cheaper than a kernel launch
                           # (raise to ~64K in production; kept small so the demo hits the kernel)


def _make_sse_kernel(tile_rows, cpc, rows_valid, needs_mask):
    """Build a kernel accumulating sum((x - y)^2) into a lane-dense (1, 128) accumulator."""

    def kernel(x_ref, y_ref, o_ref, acc_ref):
        c = pl.program_id(1)

        @pl.when(c == 0)
        def _():
            acc_ref[...] = jnp.zeros_like(acc_ref)

        d = x_ref[...].astype(jnp.float32) - y_ref[...].astype(jnp.float32)
        sq = d * d
        if needs_mask:
            # Mask rows beyond the true array extent (partial last block and
            # intended-out-of-range blocks of the split axis).
            blk = pl.program_id(0) * cpc + c
            row_ids = blk * tile_rows + lax.broadcasted_iota(
                jnp.int32, (tile_rows, _LANES), 0)
            sq = jnp.where(row_ids < rows_valid, sq, 0.0)

        # Per-lane partial sums: keeps the per-step reduction off the critical
        # scalar path; the final cross-lane reduce happens once in the wrapper.
        acc_ref[...] += jnp.sum(sq, axis=0, keepdims=True)

        @pl.when(c == cpc - 1)
        def _():
            o_ref[...] = acc_ref[...]

    return kernel


def _mse_mean_pallas(xt, yt):
    """mean((xt - yt)^2) with the reduction done in a Pallas kernel."""
    assert xt.shape == yt.shape, "MSELoss requires matching shapes"
    n = xt.size

    # Small-tensor fast path: a kernel launch + layout plumbing is not worth it.
    if n <= _PALLAS_MIN_ELEMS:
        d = xt.astype(jnp.float32) - yt.astype(jnp.float32)
        return jnp.mean(d * d)

    # Flatten in the original dtype (no wrapper upcast -> no extra HBM traffic).
    xf = jnp.ravel(xt)
    yf = jnp.ravel(yt)

    # Pad to a lane multiple only when strictly needed; zeros contribute 0 to SSE.
    rem = n % _LANES
    if rem:
        pad = _LANES - rem
        xf = jnp.pad(xf, (0, pad))
        yf = jnp.pad(yf, (0, pad))
    rows = xf.size // _LANES
    x2 = xf.reshape(rows, _LANES)
    y2 = yf.reshape(rows, _LANES)

    tile_rows = min(_TILE_ROWS, rows)          # full-dim block when rows < _TILE_ROWS
    nb = pl.cdiv(rows, tile_rows)              # number of row blocks
    num_splits = _NUM_SPLITS if nb >= _NUM_SPLITS else 1
    cpc = pl.cdiv(nb, num_splits)              # chunks per split
    needs_mask = (num_splits * cpc * tile_rows) != rows

    # Clamp the block index so no DMA is ever issued past the array; intended
    # out-of-range / partial blocks are zeroed by the in-kernel row mask above.
    def in_map(s, c):
        return (jnp.minimum(s * cpc + c, nb - 1), 0)

    kernel = _make_sse_kernel(tile_rows, cpc, rows, needs_mask)

    partials = pl.pallas_call(
        kernel,
        out_shape=jax.ShapeDtypeStruct((1, num_splits * _LANES), jnp.float32),
        grid_spec=pltpu.PrefetchScalarGridSpec(
            num_scalar_prefetch=0,
            grid=(num_splits, cpc),
            in_specs=[
                pl.BlockSpec((tile_rows, _LANES), in_map),
                pl.BlockSpec((tile_rows, _LANES), in_map),
            ],
            out_specs=pl.BlockSpec((1, _LANES), lambda s, c: (0, s)),
            scratch_shapes=[pltpu.VMEM((1, _LANES), jnp.float32)],
        ),
        compiler_params=pltpu.CompilerParams(
            dimension_semantics=("parallel", "arbitrary"),
        ),
    )(x2, y2)

    # Final (tiny) cross-lane reduce + mean with the true element count.
    return jnp.sum(partials) / jnp.float32(n)


class MultipleMSELoss:
    """JAX/Pallas equivalent of slowfast MultipleMSELoss (reduction='mean')."""

    def __init__(self, reduction="mean"):
        if reduction != "mean":
            # TODO(synk): reduction='none' returns elementwise tensors; only 'mean' implemented.
            raise NotImplementedError("only reduction='mean' is supported")

    def __call__(self, x, y):
        loss_sum = jnp.float32(0.0)
        multi_loss = []
        for xt, yt in zip(x, y):
            if isinstance(yt, tuple):
                if len(yt) == 2:
                    yt, wt = yt
                    lt = "mse"
                elif len(yt) == 3:
                    yt, wt, lt = yt
                else:
                    raise NotImplementedError
            else:
                wt, lt = 1.0, "mse"
            if lt == "mse":
                loss = _mse_mean_pallas(xt, yt)
            else:
                raise NotImplementedError
            loss_sum = loss_sum + loss * jnp.float32(wt)
            multi_loss.append(loss)
        return loss_sum, multi_loss


if __name__ == "__main__":
    key = jax.random.PRNGKey(0)
    keys = jax.random.split(key, 8)

    # Pair 0: NCHW-like f32, lane-aligned, single-block kernel path.
    x0 = jax.random.normal(keys[0], (2, 4, 16, 16), dtype=jnp.float32)
    y0 = jax.random.normal(keys[1], (2, 4, 16, 16), dtype=jnp.float32)
    # Pair 1: tiny head -> plain-JAX fast path; carries an explicit weight.
    x1 = jax.random.normal(keys[2], (2, 32), dtype=jnp.float32)
    y1 = jax.random.normal(keys[3], (2, 32), dtype=jnp.float32)
    # Pair 2: bf16 feature map -> no-upcast path, 2-split grid + row mask.
    x2 = jax.random.normal(keys[4], (2, 8, 4, 56, 56), dtype=jnp.float32).astype(jnp.bfloat16)
    y2 = jax.random.normal(keys[5], (2, 8, 4, 56, 56), dtype=jnp.float32).astype(jnp.bfloat16)
    # Pair 3: awkward size (not a multiple of 128) -> lane-pad path; 3-tuple target.
    x3 = jax.random.normal(keys[6], (3, 7, 11, 13), dtype=jnp.float32)
    y3 = jax.random.normal(keys[7], (3, 7, 11, 13), dtype=jnp.float32)

    x = [x0, x1, x2, x3]
    y = [y0, (y1, 0.5), (y2, 2.0), (y3, 0.25, "mse")]

    loss_fn = MultipleMSELoss()
    loss_sum, multi_loss = loss_fn(x, y)
    loss_sum = jax.block_until_ready(loss_sum)
    multi_loss = [jax.block_until_ready(l) for l in multi_loss]

    # Cross-check against a plain-JAX reference (f32 accumulation, like the kernel).
    def ref_mse(a, b):
        d = a.astype(jnp.float32) - b.astype(jnp.float32)
        return jnp.mean(d * d)

    refs = [ref_mse(x0, y0), ref_mse(x1, y1), ref_mse(x2, y2), ref_mse(x3, y3)]
    weights = [1.0, 0.5, 2.0, 0.25]
    ref_sum = sum(w * r for w, r in zip(weights, refs))

    for got, want in zip(multi_loss, refs):
        assert jnp.allclose(got, want, rtol=1e-4, atol=1e-5), (got, want)
    assert jnp.allclose(loss_sum, ref_sum, rtol=1e-4, atol=1e-5), (loss_sum, ref_sum)

    print("KERNEL_OK")
</pallas_src>

<mosaic_0001>
module attributes {stable_mosaic.version = 11 : i64} {
  func.func @kernel(%arg0: i32, %arg1: i32, %arg2: memref<16x128xf32, #tpu.memory_space<vmem>>, %arg3: memref<16x128xf32, #tpu.memory_space<vmem>>, %arg4: memref<1x128xf32, #tpu.memory_space<vmem>>, %arg5: memref<1x128xf32, #tpu.memory_space<vmem>>) attributes {dimension_semantics = [#tpu.dimension_semantics<parallel>, #tpu.dimension_semantics<arbitrary>], iteration_bounds = array<i64: 1, 1>, scalar_prefetch = 0 : i64, scratch_operands = 1 : i64, tpu.core_type = #tpu.core_type<tc>, window_params = [{transform_indices = @transform_0, window_bounds = array<i64: 16, 128>}, {transform_indices = @transform_1, window_bounds = array<i64: 16, 128>}, {transform_indices = @transform_2, window_bounds = array<i64: 1, 128>}]} {
    %c0_i32 = arith.constant 0 : i32
    %0 = arith.cmpi eq, %arg1, %c0_i32 : i32
    %1 = arith.extui %0 : i1 to i32
    %c0_i32_0 = arith.constant 0 : i32
    %2 = arith.cmpi ne, %1, %c0_i32_0 : i32
    scf.if %2 {
      %cst_10 = arith.constant 0.000000e+00 : f32
      %15 = vector.broadcast %cst_10 : f32 to vector<1x128xf32>
      %c0_11 = arith.constant 0 : index
      %c0_12 = arith.constant 0 : index
      %16 = vector.load %arg5[%c0_11, %c0_12] : memref<1x128xf32, #tpu.memory_space<vmem>>, vector<1x128xf32>
      tpu.vector_store %arg5[%c0_11, %c0_12], %15 {strides = array<i32>} : memref<1x128xf32, #tpu.memory_space<vmem>>, vector<1x128xf32>,
    } else {
    }
    %c0 = arith.constant 0 : index
    %c0_1 = arith.constant 0 : index
    %3 = vector.load %arg2[%c0, %c0_1] : memref<16x128xf32, #tpu.memory_space<vmem>>, vector<16x128xf32>
    %c0_2 = arith.constant 0 : index
    %c0_3 = arith.constant 0 : index
    %4 = vector.load %arg3[%c0_2, %c0_3] : memref<16x128xf32, #tpu.memory_space<vmem>>, vector<16x128xf32>
    %5 = arith.subf %3, %4 : vector<16x128xf32>
    %6 = arith.mulf %5, %5 : vector<16x128xf32>
    %c0_4 = arith.constant 0 : index
    %c0_5 = arith.constant 0 : index
    %7 = vector.load %arg5[%c0_4, %c0_5] : memref<1x128xf32, #tpu.memory_space<vmem>>, vector<1x128xf32>
    %cst = arith.constant dense<0.000000e+00> : vector<128xf32>
    %8 = vector.multi_reduction <add>, %6, %cst [0] : vector<16x128xf32> to vector<128xf32>
    %9 = vector.shape_cast %8 : vector<128xf32> to vector<1x128xf32>
    %10 = arith.addf %7, %9 : vector<1x128xf32>
    %c0_6 = arith.constant 0 : index
    %c0_7 = arith.constant 0 : index
    %11 = vector.load %arg5[%c0_6, %c0_7] : memref<1x128xf32, #tpu.memory_space<vmem>>, vector<1x128xf32>
    tpu.vector_store %arg5[%c0_6, %c0_7], %10 {strides = array<i32>} : memref<1x128xf32, #tpu.memory_space<vmem>>, vector<1x128xf32>,
    %c0_i32_8 = arith.constant 0 : i32
    %12 = arith.cmpi eq, %arg1, %c0_i32_8 : i32
    %13 = arith.extui %12 : i1 to i32
    %c0_i32_9 = arith.constant 0 : i32
    %14 = arith.cmpi ne, %13, %c0_i32_9 : i32
    scf.if %14 {
      %c0_10 = arith.constant 0 : index
      %c0_11 = arith.constant 0 : index
      %15 = vector.load %arg5[%c0_10, %c0_11] : memref<1x128xf32, #tpu.memory_space<vmem>>, vector<1x128xf32>
      %c0_12 = arith.constant 0 : index
      %c0_13 = arith.constant 0 : index
      %16 = vector.load %arg4[%c0_12, %c0_13] : memref<1x128xf32, #tpu.memory_space<vmem>>, vector<1x128xf32>
      tpu.vector_store %arg4[%c0_12, %c0_13], %15 {strides = array<i32>} : memref<1x128xf32, #tpu.memory_space<vmem>>, vector<1x128xf32>,
    } else {
    }
    return
  }
  func.func @transform_0(%arg0: i32, %arg1: i32) -> (i32, i32) {
    %c1_i32 = arith.constant 1 : i32
    %0 = arith.muli %arg0, %c1_i32 : i32
    %1 = arith.addi %0, %arg1 : i32
    %c0_i32 = arith.constant 0 : i32
    %2 = arith.minsi %1, %c0_i32 : i32
    %c0_i32_0 = arith.constant 0 : i32
    %c0_i32_1 = arith.constant 0 : i32
    return %2, %c0_i32_0 : i32, i32
  }
  func.func @transform_1(%arg0: i32, %arg1: i32) -> (i32, i32) {
    %c1_i32 = arith.constant 1 : i32
    %0 = arith.muli %arg0, %c1_i32 : i32
    %1 = arith.addi %0, %arg1 : i32
    %c0_i32 = arith.constant 0 : i32
    %2 = arith.minsi %1, %c0_i32 : i32
    %c0_i32_0 = arith.constant 0 : i32
    %c0_i32_1 = arith.constant 0 : i32
    return %2, %c0_i32_0 : i32, i32
  }
  func.func @transform_2(%arg0: i32, %arg1: i32) -> (i32, i32) {
    %c0_i32 = arith.constant 0 : i32
    %c0_i32_0 = arith.constant 0 : i32
    return %c0_i32, %arg0 : i32, i32
  }
}

</mosaic_0001>

<llo_original>
// kernel: tpu_custom_call.1
$region0: #{tpu_custom_call.1}
  #allocation0 [shape = 'u32[]', space=smem, size = 0x4, offset = 0x4, fixed_abs, tag = 'smem constant byte address 0x4 - core index']
  #allocation1 [shape = 'u32[144,128]{1,0:T(1,128)}', space=vmem, size = 0x12000, scoped, tag = 'internal scratch']
  #allocation2 [shape = 'f32[1,128]{1,0:T(1,128)}', space=vmem, size = 0x200, scoped, tag = 'scratch operand']
  %s0 = inlined_call_operand.hbm [shape: f32[16,128], index: 0, kind: input, shape index: {}]
  %s1 = inlined_call_operand.hbm [shape: f32[16,128], index: 1, kind: input, shape index: {}]
  %s2 = inlined_call_operand.hbm [shape: f32[1,128], index: 2, kind: output, shape index: {}]
  %s3 = sld [smem:[#allocation0]]
  $region34: #{tpu_custom_call.1} parent=0
    _
  %s5 = ssub.s32 1, %s3
  %s6 = scalar_select 0, %s5, %s3
  $region1: #{tpu_custom_call.1} parent=0
    #allocation3 [shape = 'u8[8192]{0}', space=vmem, size = 0x2000, scoped, tag = 'input window, operand 0, single buffered']
    #allocation4 [shape = 's32[1]{0}', space=sflag, size = 0x4, scoped, tag = 'scoped memory for tpu_custom_call.1']
    #allocation5 [shape = 's32[1]{0}', space=sflag, size = 0x4, scoped, tag = 'scoped memory for tpu_custom_call.1']
    #allocation6 [shape = 'u8[8192]{0}', space=vmem, size = 0x2000, scoped, tag = 'input window, operand 1, single buffered']
    #allocation7 [shape = 's32[1]{0}', space=sflag, size = 0x4, scoped, tag = 'scoped memory for tpu_custom_call.1']
    #allocation8 [shape = 'u8[512]{0}', space=vmem, size = 0x400, scoped, tag = 'output window, operand 0, single buffered']
    %7 = vsyncpa [#allocation4], 0
    %8 = vsyncpa [#allocation7], 0
    %9 = vsyncpa [#allocation5], 0
    // Predicated region
    $region2: #{tpu_custom_call.1} parent=1 // pred_check
      _
    $region3: #{tpu_custom_call.1} parent=1 // pred_check_branch
      %11 = sbr.rel (0) target = $region5
    $region4: #{tpu_custom_call.1} parent=1 // pred_region
      %s12 = sadd.s32 0, 0
      %p13 = scmp.lt.s32.totalorder %s12, 0
      %s14 = scalar_select %p13, %s12, 0
      %s15 = smul.u32 2, %s14
      %s17 = ssub.s32 256, 256
      %18 = vsyncadd [#allocation4], %s17
      %s19 = smul.addr %s15, 128
      %s20 = scalar_lea.hbm %s0, %s19
      %s21 = sshll.u32 [#allocation3], 4
      %s22 = int_to_ptr.vmem [resolvable:$true] %s21
      %27 = dma.hbm_to_vmem [thread:$0]  %s20, 256, %s22, [#allocation4], 128, 128, 8
    $region5: #{tpu_custom_call.1} parent=1 // pred_fallthru
      _
    // Predicated region
    $region6: #{tpu_custom_call.1} parent=1 // pred_check
      _
    $region7: #{tpu_custom_call.1} parent=1 // pred_check_branch
      %29 = sbr.rel (0) target = $region9
    $region8: #{tpu_custom_call.1} parent=1 // pred_region
      %s30 = sadd.s32 0, 0
      %p31 = scmp.lt.s32.totalorder %s30, 0
      %s32 = scalar_select %p31, %s30, 0
      %s33 = smul.u32 2, %s32
      %s35 = ssub.s32 256, 256
      %36 = vsyncadd [#allocation7], %s35
      %s37 = smul.addr %s33, 128
      %s38 = scalar_lea.hbm %s1, %s37
      %s39 = sshll.u32 [#allocation6], 4
      %s40 = int_to_ptr.vmem [resolvable:$true] %s39
      %45 = dma.hbm_to_vmem [thread:$0]  %s38, 256, %s40, [#allocation7], 128, 128, 8
    $region9: #{tpu_custom_call.1} parent=1 // pred_fallthru
      _
    // Predicated region
    $region10: #{tpu_custom_call.1} parent=1 // pred_check
      _
    $region11: #{tpu_custom_call.1} parent=1 // pred_check_branch
      %47 = sbr.rel (0) target = $region13
    $region12: #{tpu_custom_call.1} parent=1 // pred_region
      %48 = dma.done [#allocation4], 256
    $region13: #{tpu_custom_call.1} parent=1 // pred_fallthru
      _
    // Predicated region
    $region14: #{tpu_custom_call.1} parent=1 // pred_check
      _
    $region15: #{tpu_custom_call.1} parent=1 // pred_check_branch
      %50 = sbr.rel (0) target = $region17
    $region16: #{tpu_custom_call.1} parent=1 // pred_region
      %51 = dma.done [#allocation7], 256
    $region17: #{tpu_custom_call.1} parent=1 // pred_fallthru
      _
    %s52 = sadd.s32 0, 0
    %p53 = scmp.lt.s32.totalorder %s52, 0
    %s54 = scalar_select %p53, %s52, 0
    %s55 = smul.u32 2, %s54
    %s56 = sadd.s32 0, 0
    %p57 = scmp.lt.s32.totalorder %s56, 0
    %s58 = scalar_select %p57, %s56, 0
    %s59 = smul.u32 2, %s58
    %p60 = scmp.eq.s32.totalorder 0, 0
    // Predicated region
    $region18: #{tpu_custom_call.1} parent=1 // pred_check
      %p61 = pneg %p60
    $region19: #{tpu_custom_call.1} parent=1 // pred_check_branch
      %63 = sbr.rel (%p61) target = $region21
    $region20: #{tpu_custom_call.1} parent=1 // pred_region
      %64 = vst [vmem:[#allocation2] sm:$0x1] 0.0
    $region21: #{tpu_custom_call.1} parent=1 // pred_fallthru
      _
    %v65 = vld [vmem:[#allocation3] sm:$0xff]
    %v66 = vld [vmem:[#allocation3 + $0x8] sm:$0xff]
    %v67 = vld [vmem:[#allocation6] sm:$0xff]
    %v68 = vld [vmem:[#allocation6 + $0x8] sm:$0xff]
    %v69 = vsub.f32 %v65, %v67
    %v70 = vsub.f32 %v66, %v68
    %v71 = vmul.f32 %v69, %v69
    %v72 = vmul.f32 %v70, %v70
    %v73 = vld [vmem:[#allocation2] sm:$0x1]
    %v74 = vadd.f32 %v71, %v72
    %v75 = vrot.slane %v74, 4
    %v76 = vadd.f32 %v74, %v75
    %v77 = vrot.slane %v76, 2
    %v78 = vadd.f32 %v76, %v77
    %v79 = vrot.slane %v78, 1
    %v80 = vadd.f32 %v78, %v79
    %v81 = vadd.f32 %v73, %v80
    %82 = vst [vmem:[#allocation2] sm:$0x1] %v81
    // Predicated region
    $region22: #{tpu_custom_call.1} parent=1 // pred_check
      %p83 = pneg %p60
    $region23: #{tpu_custom_call.1} parent=1 // pred_check_branch
      %85 = sbr.rel (%p83) target = $region25
    $region24: #{tpu_custom_call.1} parent=1 // pred_region
      %v86 = vld [vmem:[#allocation2] sm:$0x1]
      %87 = vst [vmem:[#allocation8] sm:$0x1] %v86
    $region25: #{tpu_custom_call.1} parent=1 // pred_fallthru
      _
    // Predicated region
    $region26: #{tpu_custom_call.1} parent=1 // pred_check
      _
    $region27: #{tpu_custom_call.1} parent=1 // pred_check_branch
      %89 = sbr.rel (0) target = $region29
    $region28: #{tpu_custom_call.1} parent=1 // pred_region
      %s91 = ssub.s32 16, 16
      %92 = vsyncadd [#allocation5], %s91
      %s94 = sshll.u32 [#allocation8], 4
      %s95 = int_to_ptr.vmem [resolvable:$true] %s94
      %97 = dma.vmem_to_hbm [thread:$0]  %s95, 16, %s2, [#allocation5]
    $region29: #{tpu_custom_call.1} parent=1 // pred_fallthru
      _
    // Predicated region
    $region30: #{tpu_custom_call.1} parent=1 // pred_check
      _
    $region31: #{tpu_custom_call.1} parent=1 // pred_check_branch
      %99 = sbr.rel (0) target = $region33
    $region32: #{tpu_custom_call.1} parent=1 // pred_region
      %100 = dma.done [#allocation5], 16
    $region33: #{tpu_custom_call.1} parent=1 // pred_fallthru
      _
    %101 = vsyncpa [#allocation4], 1
    %102 = vsyncpa [#allocation7], 1
    %103 = vsyncpa [#allocation5], 1

</llo_original>
